<compile_context>
chip_gen: v5e
topology: v5e:2x2
jax: 0.10.0
libtpu: 0.0.40
codegen_flags: <defaults>
</compile_context>

<pallas_src>
import functools

import jax
import jax.numpy as jnp
from jax.experimental import pallas as pl
from jax.experimental.pallas import tpu as pltpu


def _round_up(a: int, b: int) -> int:
    return (a + b - 1) // b * b


def _cdiv(a: int, b: int) -> int:
    return (a + b - 1) // b


def _vmem_capacity_bytes() -> int:
    try:
        return int(pltpu.get_tpu_info().vmem_capacity_bytes)
    except Exception:
        return 64 << 20          # conservative (v7x-sized) fallback if query unavailable


def _resident_spec(block_shape, index_map):
    """BlockSpec for a grid-resident (constant index_map) input: single-buffered."""
    if hasattr(pl, "Buffered"):
        try:
            return pl.BlockSpec(block_shape, index_map, pipeline_mode=pl.Buffered(1))
        except TypeError:
            pass
    return pl.BlockSpec(block_shape, index_map)


def _residual_mlp_kernel(x_ref, w0_ref, p0_ref, wm_ref, pm_ref, wo_ref, bo_ref, o_ref,
                         *, num_blocks: int, num_hidden_layers: int,
                         hidden_real: int, eps: float, unroll_blocks: bool):
    """One row-tile of the full ResidualMLP forward (all layers fused, weights resident)."""
    inv_h = 1.0 / float(hidden_real)

    def linear_ln_relu(h, w, b, g, bt):
        # Linear on the MXU: bf16 operands, f32 accumulation.
        y = jnp.dot(h.astype(jnp.bfloat16), w,
                    preferred_element_type=jnp.float32) + b
        # One-pass LayerNorm statistics over the REAL hidden width.  Zero-padded
        # lanes contribute exactly 0 to both sums (W cols and b entries are 0 there).
        s1 = jnp.sum(y, axis=-1, keepdims=True)
        s2 = jnp.sum(y * y, axis=-1, keepdims=True)
        mu = s1 * inv_h
        var = jnp.maximum(s2 * inv_h - mu * mu, 0.0)
        y = (y - mu) * jax.lax.rsqrt(var + eps)
        # gamma = beta = 0 on padded lanes -> padded lanes return to exactly 0.
        return jnp.maximum(y * g + bt, 0.0)

    x = x_ref[...].astype(jnp.float32)

    # Input projection layer (p0 rows: [bias, gamma, beta]).
    h = linear_ln_relu(x, w0_ref[...],
                       p0_ref[0:1, :], p0_ref[1:2, :], p0_ref[2:3, :])

    # Residual blocks.
    def block_body(blk, h):
        r = h
        for j in range(num_hidden_layers):
            idx = blk * num_hidden_layers + j
            prm = pm_ref[idx]                                # (3, hidden_pad), f32
            r = linear_ln_relu(r, wm_ref[idx],
                               prm[0:1, :], prm[1:2, :], prm[2:3, :])
        return h + r

    if unroll_blocks:
        for blk in range(num_blocks):
            h = block_body(blk, h)
    else:
        # Deep configs: bound live ranges with a real loop instead of a huge unroll.
        h = jax.lax.fori_loop(0, num_blocks, block_body, h)

    # Final Linear (no norm / activation); single lane-dense store per tile.
    out = jnp.dot(h.astype(jnp.bfloat16), wo_ref[...],
                  preferred_element_type=jnp.float32) + bo_ref[...]
    o_ref[...] = out.astype(o_ref.dtype)


def residual_mlp_forward(x, params, *, num_blocks: int, num_hidden_layers: int,
                         eps: float = 1e-5, max_tile_m: int = 1024):
    """JAX/Pallas equivalent of ResidualMLP.forward (norm='layer', ReLU, dropout=0)."""
    x = jnp.asarray(x)
    *lead, d_in = x.shape
    x2 = x.reshape(-1, d_in)
    m = x2.shape[0]

    w0, b0, g0, bt0 = params["w0"], params["b0"], params["g0"], params["bt0"]
    wm, bm, gm, btm = params["wm"], params["bm"], params["gm"], params["btm"]
    wo, bo = params["wo"], params["bo"]
    hidden = w0.shape[1]
    d_out = wo.shape[1]
    num_mid = wm.shape[0]
    assert num_mid == num_blocks * num_hidden_layers and num_mid >= 1

    # ---- lane-dense feature padding (multiples of 128) --------------------------------
    d_in_p = _round_up(d_in, 128)
    hid_p = _round_up(hidden, 128)
    d_out_p = _round_up(d_out, 128)

    x2p = jnp.pad(x2, ((0, 0), (0, d_in_p - d_in)))

    w0p = jnp.pad(w0, ((0, d_in_p - d_in), (0, hid_p - hidden))).astype(jnp.bfloat16)
    wmp = jnp.pad(wm, ((0, 0), (0, hid_p - hidden), (0, hid_p - hidden))).astype(jnp.bfloat16)
    wop = jnp.pad(wo, ((0, hid_p - hidden), (0, d_out_p - d_out))).astype(jnp.bfloat16)

    def pad_vec(v, n):
        v = jnp.reshape(jnp.asarray(v, jnp.float32), (-1,))
        return jnp.pad(v, (0, n - v.shape[0]))

    # Packed per-layer (bias, gamma, beta); padded lanes are 0 so LN output there is 0.
    p0 = jnp.stack([pad_vec(b0, hid_p), pad_vec(g0, hid_p), pad_vec(bt0, hid_p)])  # (3, hid_p)
    pm = jnp.stack([
        jnp.pad(bm.reshape(num_mid, hidden).astype(jnp.float32), ((0, 0), (0, hid_p - hidden))),
        jnp.pad(gm.reshape(num_mid, hidden).astype(jnp.float32), ((0, 0), (0, hid_p - hidden))),
        jnp.pad(btm.reshape(num_mid, hidden).astype(jnp.float32), ((0, 0), (0, hid_p - hidden))),
    ], axis=1)                                                                      # (num_mid, 3, hid_p)
    bop = pad_vec(bo, d_out_p).reshape(1, d_out_p)

    # ---- row tiling: balanced tiles; grid >= 2 when there is enough work (megacore) ----
    num_tiles = _cdiv(m, max_tile_m)
    if m >= 16:
        num_tiles = max(num_tiles, 2)
    tile_m = _round_up(_cdiv(m, num_tiles), 8)
    m_pad = num_tiles * tile_m
    if m_pad != m:
        x2p = jnp.pad(x2p, ((0, m_pad - m), (0, 0)))
    grid = (num_tiles,)

    kernel = functools.partial(_residual_mlp_kernel,
                               num_blocks=num_blocks,
                               num_hidden_layers=num_hidden_layers,
                               hidden_real=hidden,
                               eps=eps,
                               unroll_blocks=(num_mid <= 8))

    # ---- VMEM budget, derived per TPU generation ---------------------------------------
    weight_bytes = ((w0p.size + wmp.size + wop.size) * 2          # bf16 weights (single-buffered)
                    + (p0.size + pm.size + bop.size) * 4)         # f32 LN/bias packs
    io_bytes = 2 * tile_m * d_in_p * x2p.dtype.itemsize + 2 * tile_m * d_out_p * x.dtype.itemsize
    act_bytes = 6 * tile_m * hid_p * 4                            # f32 working set per layer
    vmem_needed = 2 * weight_bytes + io_bytes + act_bytes + (8 << 20)   # 2x: slack if Buffered(1) unsupported
    vmem_cap = int(0.85 * _vmem_capacity_bytes())                 # ~108 MiB on v5e/v6e, ~54 MiB on v7x
    vmem_limit = int(max(min(vmem_needed, vmem_cap), 32 << 20))

    flops = 2 * m_pad * (d_in_p * hid_p + num_mid * hid_p * hid_p + hid_p * d_out_p)
    transcendentals = m_pad * (1 + num_mid)                       # one rsqrt per LayerNorm row
    bytes_accessed = (x2p.size * x2p.dtype.itemsize
                      + m_pad * d_out_p * x.dtype.itemsize + weight_bytes)

    out = pl.pallas_call(
        kernel,
        out_shape=jax.ShapeDtypeStruct((m_pad, d_out_p), x.dtype),
        grid=grid,
        in_specs=[
            pl.BlockSpec((tile_m, d_in_p), lambda i: (i, 0)),                  # x tile (streamed)
            _resident_spec((d_in_p, hid_p), lambda i: (0, 0)),                 # W0      (bf16, resident)
            _resident_spec((3, hid_p), lambda i: (0, 0)),                      # b0/g0/bt0 pack
            _resident_spec((num_mid, hid_p, hid_p), lambda i: (0, 0, 0)),      # mid W stack (bf16)
            _resident_spec((num_mid, 3, hid_p), lambda i: (0, 0, 0)),          # mid b/g/bt pack
            _resident_spec((hid_p, d_out_p), lambda i: (0, 0)),                # Wout    (bf16)
            _resident_spec((1, d_out_p), lambda i: (0, 0)),                    # bout
        ],
        out_specs=pl.BlockSpec((tile_m, d_out_p), lambda i: (i, 0)),
        compiler_params=pltpu.CompilerParams(
            dimension_semantics=("parallel",),
            vmem_limit_bytes=vmem_limit),
        cost_estimate=pl.CostEstimate(
            flops=int(flops),
            transcendentals=int(transcendentals),
            bytes_accessed=int(bytes_accessed)),
    )(x2p, w0p, p0, wmp, pm, wop, bop)

    out = out[:m, :d_out]
    return out.reshape(*lead, d_out)


def init_params(key, input_dim, hidden_dim, output_dim, num_blocks, num_hidden_layers,
                dtype=jnp.float32):
    """Deterministic parameters in the natural (unpadded) layout; W stored as (in, out)."""
    num_mid = num_blocks * num_hidden_layers
    ks = jax.random.split(key, 6)

    def linear(k, fan_in, fan_out):
        bound = 1.0 / (fan_in ** 0.5)
        kw, kb = jax.random.split(k)
        w = jax.random.uniform(kw, (fan_in, fan_out), dtype, -bound, bound)
        b = jax.random.uniform(kb, (1, fan_out), dtype, -bound, bound)
        return w, b

    w0, b0 = linear(ks[0], input_dim, hidden_dim)
    wm_list, bm_list = [], []
    for i in range(num_mid):
        w, b = linear(jax.random.fold_in(ks[1], i), hidden_dim, hidden_dim)
        wm_list.append(w)
        bm_list.append(b)
    wm = jnp.stack(wm_list)                      # (L, H, H)
    bm = jnp.stack(bm_list)                      # (L, 1, H)
    wo, bo = linear(ks[2], hidden_dim, output_dim)

    # LayerNorm affine params (torch init is gamma=1, beta=0; perturb slightly to
    # actually exercise the affine path).
    g0 = 1.0 + 0.05 * jax.random.normal(ks[3], (1, hidden_dim), dtype)
    bt0 = 0.05 * jax.random.normal(ks[4], (1, hidden_dim), dtype)
    gm = 1.0 + 0.05 * jax.random.normal(ks[5], (num_mid, 1, hidden_dim), dtype)
    btm = 0.05 * jax.random.normal(jax.random.fold_in(ks[5], 7),
                                   (num_mid, 1, hidden_dim), dtype)

    return dict(w0=w0, b0=b0, g0=g0, bt0=bt0, wm=wm, bm=bm, gm=gm, btm=btm, wo=wo, bo=bo)


def _reference(x, params, *, num_blocks, num_hidden_layers, eps=1e-5):
    """Pure-jnp reference mirroring ResidualMLP.forward exactly (f32, two-pass LN)."""
    def layer(h, w, b, g, bt):
        y = jnp.dot(h, w) + b
        mu = jnp.mean(y, axis=-1, keepdims=True)
        var = jnp.mean(jnp.square(y - mu), axis=-1, keepdims=True)
        y = (y - mu) * jax.lax.rsqrt(var + eps)
        return jnp.maximum(y * g + bt, 0.0)

    h = layer(x, params["w0"], params["b0"][0], params["g0"][0], params["bt0"][0])
    idx = 0
    for _ in range(num_blocks):
        r = h
        for _ in range(num_hidden_layers):
            r = layer(r, params["wm"][idx], params["bm"][idx, 0],
                      params["gm"][idx, 0], params["btm"][idx, 0])
            idx += 1
        h = h + r
    return jnp.dot(h, params["wo"]) + params["bo"][0]


if __name__ == "__main__":
    key = jax.random.PRNGKey(0)
    batch, seq = 2, 8
    input_dim, hidden_dim, output_dim = 32, 64, 32
    num_hidden_layers, num_blocks = 2, 2

    kx, kp = jax.random.split(key)
    x = jax.random.normal(kx, (batch, seq, input_dim), dtype=jnp.float32)
    params = init_params(kp, input_dim, hidden_dim, output_dim, num_blocks, num_hidden_layers)

    out = residual_mlp_forward(x, params, num_blocks=num_blocks,
                               num_hidden_layers=num_hidden_layers)
    out = jax.block_until_ready(out)
    assert out.shape == (batch, seq, output_dim), out.shape

    ref = _reference(x, params, num_blocks=num_blocks, num_hidden_layers=num_hidden_layers)
    # Tolerance covers the bf16-operand / f32-accumulate MXU path (and the one-pass LN
    # statistics) against the f32 reference; semantic bugs give O(1) diffs.
    assert jnp.allclose(out, ref, atol=5e-2, rtol=5e-2), \
        float(jnp.max(jnp.abs(out - ref)))

    # Also exercise a 2-D input whose row count is not a multiple of the tile (padding path).
    x2 = jax.random.normal(jax.random.PRNGKey(1), (5, input_dim), dtype=jnp.float32)
    out2 = jax.block_until_ready(
        residual_mlp_forward(x2, params, num_blocks=num_blocks,
                             num_hidden_layers=num_hidden_layers))
    ref2 = _reference(x2, params, num_blocks=num_blocks, num_hidden_layers=num_hidden_layers)
    assert out2.shape == (5, output_dim), out2.shape
    assert jnp.allclose(out2, ref2, atol=5e-2, rtol=5e-2), \
        float(jnp.max(jnp.abs(out2 - ref2)))

    # TODO(synk): norm='batch'/'ada' variants and train-time dropout are not implemented;
    # the module's defaults (norm='layer', dropout=0.0) are what this kernel covers.
    print("KERNEL_OK")
</pallas_src>

<mosaic_0001>
module attributes {stable_mosaic.version = 11 : i64} {
  func.func @_residual_mlp_kernel(%arg0: i32, %arg1: memref<8x128xf32, #tpu.memory_space<vmem>>, %arg2: memref<128x128xbf16, #tpu.memory_space<vmem>>, %arg3: memref<3x128xf32, #tpu.memory_space<vmem>>, %arg4: memref<4x128x128xbf16, #tpu.memory_space<vmem>>, %arg5: memref<4x3x128xf32, #tpu.memory_space<vmem>>, %arg6: memref<128x128xbf16, #tpu.memory_space<vmem>>, %arg7: memref<1x128xf32, #tpu.memory_space<vmem>>, %arg8: memref<8x128xf32, #tpu.memory_space<vmem>>) attributes {dimension_semantics = [#tpu.dimension_semantics<parallel>], iteration_bounds = array<i64: 2>, scalar_prefetch = 0 : i64, scratch_operands = 0 : i64, tpu.core_type = #tpu.core_type<tc>, window_params = [{transform_indices = @transform_0, window_bounds = array<i64: 8, 128>}, {pipeline_mode = #tpu.pipeline_mode<synchronous>, transform_indices = @transform_1, window_bounds = array<i64: 128, 128>}, {pipeline_mode = #tpu.pipeline_mode<synchronous>, transform_indices = @transform_2, window_bounds = array<i64: 3, 128>}, {pipeline_mode = #tpu.pipeline_mode<synchronous>, transform_indices = @transform_3, window_bounds = array<i64: 4, 128, 128>}, {pipeline_mode = #tpu.pipeline_mode<synchronous>, transform_indices = @transform_4, window_bounds = array<i64: 4, 3, 128>}, {pipeline_mode = #tpu.pipeline_mode<synchronous>, transform_indices = @transform_5, window_bounds = array<i64: 128, 128>}, {pipeline_mode = #tpu.pipeline_mode<synchronous>, transform_indices = @transform_6, window_bounds = array<i64: 1, 128>}, {transform_indices = @transform_7, window_bounds = array<i64: 8, 128>}]} {
    %c0 = arith.constant 0 : index
    %c0_0 = arith.constant 0 : index
    %0 = vector.load %arg1[%c0, %c0_0] : memref<8x128xf32, #tpu.memory_space<vmem>>, vector<8x128xf32>
    %c0_1 = arith.constant 0 : index
    %c0_2 = arith.constant 0 : index
    %1 = vector.load %arg2[%c0_1, %c0_2] : memref<128x128xbf16, #tpu.memory_space<vmem>>, vector<128x128xbf16>
    %c0_3 = arith.constant 0 : index
    %c0_4 = arith.constant 0 : index
    %2 = vector.load %arg3[%c0_3, %c0_4] : memref<3x128xf32, #tpu.memory_space<vmem>>, vector<1x128xf32>
    %c1 = arith.constant 1 : index
    %c0_5 = arith.constant 0 : index
    %3 = vector.load %arg3[%c1, %c0_5] : memref<3x128xf32, #tpu.memory_space<vmem>>, vector<1x128xf32>
    %c2 = arith.constant 2 : index
    %c0_6 = arith.constant 0 : index
    %4 = vector.load %arg3[%c2, %c0_6] : memref<3x128xf32, #tpu.memory_space<vmem>>, vector<1x128xf32>
    %5 = arith.truncf %0 : vector<8x128xf32> to vector<8x128xbf16>
    %cst = arith.constant dense<0.000000e+00> : vector<8x128xf32>
    %6 = tpu.matmul %5, %1, %cst {dimension_numbers = #tpu.dot_dimension_numbers<[1], [0], [0], [1], [0, 0, 1, 1], [], []>} : vector<8x128xbf16>, vector<128x128xbf16>, vector<8x128xf32> -> vector<8x128xf32>
    %7 = vector.broadcast %2 : vector<1x128xf32> to vector<8x128xf32>
    %8 = arith.addf %6, %7 : vector<8x128xf32>
    %cst_7 = arith.constant dense<0.000000e+00> : vector<8xf32>
    %9 = vector.multi_reduction <add>, %8, %cst_7 [1] : vector<8x128xf32> to vector<8xf32>
    %10 = vector.shape_cast %9 : vector<8xf32> to vector<8x1xf32>
    %11 = arith.mulf %8, %8 : vector<8x128xf32>
    %cst_8 = arith.constant dense<0.000000e+00> : vector<8xf32>
    %12 = vector.multi_reduction <add>, %11, %cst_8 [1] : vector<8x128xf32> to vector<8xf32>
    %13 = vector.shape_cast %12 : vector<8xf32> to vector<8x1xf32>
    %cst_9 = arith.constant 1.562500e-02 : f32
    %14 = vector.broadcast %cst_9 : f32 to vector<8x1xf32>
    %15 = arith.mulf %10, %14 : vector<8x1xf32>
    %cst_10 = arith.constant 1.562500e-02 : f32
    %16 = vector.broadcast %cst_10 : f32 to vector<8x1xf32>
    %17 = arith.mulf %13, %16 : vector<8x1xf32>
    %18 = arith.mulf %15, %15 : vector<8x1xf32>
    %19 = arith.subf %17, %18 : vector<8x1xf32>
    %cst_11 = arith.constant 0.000000e+00 : f32
    %20 = vector.broadcast %cst_11 : f32 to vector<8x1xf32>
    %21 = arith.maximumf %19, %20 : vector<8x1xf32>
    %22 = vector.broadcast %15 : vector<8x1xf32> to vector<8x128xf32>
    %23 = arith.subf %8, %22 : vector<8x128xf32>
    %cst_12 = arith.constant 9.99999974E-6 : f32
    %24 = vector.broadcast %cst_12 : f32 to vector<8x1xf32>
    %25 = arith.addf %21, %24 : vector<8x1xf32>
    %26 = math.rsqrt %25 : vector<8x1xf32>
    %27 = vector.broadcast %26 : vector<8x1xf32> to vector<8x128xf32>
    %28 = arith.mulf %23, %27 : vector<8x128xf32>
    %29 = vector.broadcast %3 : vector<1x128xf32> to vector<8x128xf32>
    %30 = arith.mulf %28, %29 : vector<8x128xf32>
    %31 = vector.broadcast %4 : vector<1x128xf32> to vector<8x128xf32>
    %32 = arith.addf %30, %31 : vector<8x128xf32>
    %cst_13 = arith.constant 0.000000e+00 : f32
    %33 = vector.broadcast %cst_13 : f32 to vector<8x128xf32>
    %34 = arith.maximumf %32, %33 : vector<8x128xf32>
    %c0_14 = arith.constant 0 : index
    %c0_15 = arith.constant 0 : index
    %c0_16 = arith.constant 0 : index
    %35 = vector.load %arg5[%c0_14, %c0_15, %c0_16] : memref<4x3x128xf32, #tpu.memory_space<vmem>>, vector<1x3x128xf32>
    %36 = vector.shape_cast %35 : vector<1x3x128xf32> to vector<3x128xf32>
    %c0_17 = arith.constant 0 : index
    %c0_18 = arith.constant 0 : index
    %c0_19 = arith.constant 0 : index
    %37 = vector.load %arg4[%c0_17, %c0_18, %c0_19] : memref<4x128x128xbf16, #tpu.memory_space<vmem>>, vector<1x128x128xbf16>
    %38 = vector.shape_cast %37 : vector<1x128x128xbf16> to vector<128x128xbf16>
    %39 = vector.extract_strided_slice %36 {offsets = [0, 0], sizes = [1, 128], strides = [1, 1]} : vector<3x128xf32> to vector<1x128xf32>
    %40 = vector.extract_strided_slice %36 {offsets = [1, 0], sizes = [1, 128], strides = [1, 1]} : vector<3x128xf32> to vector<1x128xf32>
    %41 = vector.extract_strided_slice %36 {offsets = [2, 0], sizes = [1, 128], strides = [1, 1]} : vector<3x128xf32> to vector<1x128xf32>
    %42 = arith.truncf %34 : vector<8x128xf32> to vector<8x128xbf16>
    %cst_20 = arith.constant dense<0.000000e+00> : vector<8x128xf32>
    %43 = tpu.matmul %42, %38, %cst_20 {dimension_numbers = #tpu.dot_dimension_numbers<[1], [0], [0], [1], [0, 0, 1, 1], [], []>} : vector<8x128xbf16>, vector<128x128xbf16>, vector<8x128xf32> -> vector<8x128xf32>
    %44 = vector.broadcast %39 : vector<1x128xf32> to vector<8x128xf32>
    %45 = arith.addf %43, %44 : vector<8x128xf32>
    %cst_21 = arith.constant dense<0.000000e+00> : vector<8xf32>
    %46 = vector.multi_reduction <add>, %45, %cst_21 [1] : vector<8x128xf32> to vector<8xf32>
    %47 = vector.shape_cast %46 : vector<8xf32> to vector<8x1xf32>
    %48 = arith.mulf %45, %45 : vector<8x128xf32>
    %cst_22 = arith.constant dense<0.000000e+00> : vector<8xf32>
    %49 = vector.multi_reduction <add>, %48, %cst_22 [1] : vector<8x128xf32> to vector<8xf32>
    %50 = vector.shape_cast %49 : vector<8xf32> to vector<8x1xf32>
    %cst_23 = arith.constant 1.562500e-02 : f32
    %51 = vector.broadcast %cst_23 : f32 to vector<8x1xf32>
    %52 = arith.mulf %47, %51 : vector<8x1xf32>
    %cst_24 = arith.constant 1.562500e-02 : f32
    %53 = vector.broadcast %cst_24 : f32 to vector<8x1xf32>
    %54 = arith.mulf %50, %53 : vector<8x1xf32>
    %55 = arith.mulf %52, %52 : vector<8x1xf32>
    %56 = arith.subf %54, %55 : vector<8x1xf32>
    %cst_25 = arith.constant 0.000000e+00 : f32
    %57 = vector.broadcast %cst_25 : f32 to vector<8x1xf32>
    %58 = arith.maximumf %56, %57 : vector<8x1xf32>
    %59 = vector.broadcast %52 : vector<8x1xf32> to vector<8x128xf32>
    %60 = arith.subf %45, %59 : vector<8x128xf32>
    %cst_26 = arith.constant 9.99999974E-6 : f32
    %61 = vector.broadcast %cst_26 : f32 to vector<8x1xf32>
    %62 = arith.addf %58, %61 : vector<8x1xf32>
    %63 = math.rsqrt %62 : vector<8x1xf32>
    %64 = vector.broadcast %63 : vector<8x1xf32> to vector<8x128xf32>
    %65 = arith.mulf %60, %64 : vector<8x128xf32>
    %66 = vector.broadcast %40 : vector<1x128xf32> to vector<8x128xf32>
    %67 = arith.mulf %65, %66 : vector<8x128xf32>
    %68 = vector.broadcast %41 : vector<1x128xf32> to vector<8x128xf32>
    %69 = arith.addf %67, %68 : vector<8x128xf32>
    %cst_27 = arith.constant 0.000000e+00 : f32
    %70 = vector.broadcast %cst_27 : f32 to vector<8x128xf32>
    %71 = arith.maximumf %69, %70 : vector<8x128xf32>
    %c1_28 = arith.constant 1 : index
    %c0_29 = arith.constant 0 : index
    %c0_30 = arith.constant 0 : index
    %72 = vector.load %arg5[%c1_28, %c0_29, %c0_30] : memref<4x3x128xf32, #tpu.memory_space<vmem>>, vector<1x3x128xf32>
    %73 = vector.shape_cast %72 : vector<1x3x128xf32> to vector<3x128xf32>
    %c1_31 = arith.constant 1 : index
    %c0_32 = arith.constant 0 : index
    %c0_33 = arith.constant 0 : index
    %74 = vector.load %arg4[%c1_31, %c0_32, %c0_33] : memref<4x128x128xbf16, #tpu.memory_space<vmem>>, vector<1x128x128xbf16>
    %75 = vector.shape_cast %74 : vector<1x128x128xbf16> to vector<128x128xbf16>
    %76 = vector.extract_strided_slice %73 {offsets = [0, 0], sizes = [1, 128], strides = [1, 1]} : vector<3x128xf32> to vector<1x128xf32>
    %77 = vector.extract_strided_slice %73 {offsets = [1, 0], sizes = [1, 128], strides = [1, 1]} : vector<3x128xf32> to vector<1x128xf32>
    %78 = vector.extract_strided_slice %73 {offsets = [2, 0], sizes = [1, 128], strides = [1, 1]} : vector<3x128xf32> to vector<1x128xf32>
    %79 = arith.truncf %71 : vector<8x128xf32> to vector<8x128xbf16>
    %cst_34 = arith.constant dense<0.000000e+00> : vector<8x128xf32>
    %80 = tpu.matmul %79, %75, %cst_34 {dimension_numbers = #tpu.dot_dimension_numbers<[1], [0], [0], [1], [0, 0, 1, 1], [], []>} : vector<8x128xbf16>, vector<128x128xbf16>, vector<8x128xf32> -> vector<8x128xf32>
    %81 = vector.broadcast %76 : vector<1x128xf32> to vector<8x128xf32>
    %82 = arith.addf %80, %81 : vector<8x128xf32>
    %cst_35 = arith.constant dense<0.000000e+00> : vector<8xf32>
    %83 = vector.multi_reduction <add>, %82, %cst_35 [1] : vector<8x128xf32> to vector<8xf32>
    %84 = vector.shape_cast %83 : vector<8xf32> to vector<8x1xf32>
    %85 = arith.mulf %82, %82 : vector<8x128xf32>
    %cst_36 = arith.constant dense<0.000000e+00> : vector<8xf32>
    %86 = vector.multi_reduction <add>, %85, %cst_36 [1] : vector<8x128xf32> to vector<8xf32>
    %87 = vector.shape_cast %86 : vector<8xf32> to vector<8x1xf32>
    %cst_37 = arith.constant 1.562500e-02 : f32
    %88 = vector.broadcast %cst_37 : f32 to vector<8x1xf32>
    %89 = arith.mulf %84, %88 : vector<8x1xf32>
    %cst_38 = arith.constant 1.562500e-02 : f32
    %90 = vector.broadcast %cst_38 : f32 to vector<8x1xf32>
    %91 = arith.mulf %87, %90 : vector<8x1xf32>
    %92 = arith.mulf %89, %89 : vector<8x1xf32>
    %93 = arith.subf %91, %92 : vector<8x1xf32>
    %cst_39 = arith.constant 0.000000e+00 : f32
    %94 = vector.broadcast %cst_39 : f32 to vector<8x1xf32>
    %95 = arith.maximumf %93, %94 : vector<8x1xf32>
    %96 = vector.broadcast %89 : vector<8x1xf32> to vector<8x128xf32>
    %97 = arith.subf %82, %96 : vector<8x128xf32>
    %cst_40 = arith.constant 9.99999974E-6 : f32
    %98 = vector.broadcast %cst_40 : f32 to vector<8x1xf32>
    %99 = arith.addf %95, %98 : vector<8x1xf32>
    %100 = math.rsqrt %99 : vector<8x1xf32>
    %101 = vector.broadcast %100 : vector<8x1xf32> to vector<8x128xf32>
    %102 = arith.mulf %97, %101 : vector<8x128xf32>
    %103 = vector.broadcast %77 : vector<1x128xf32> to vector<8x128xf32>
    %104 = arith.mulf %102, %103 : vector<8x128xf32>
    %105 = vector.broadcast %78 : vector<1x128xf32> to vector<8x128xf32>
    %106 = arith.addf %104, %105 : vector<8x128xf32>
    %cst_41 = arith.constant 0.000000e+00 : f32
    %107 = vector.broadcast %cst_41 : f32 to vector<8x128xf32>
    %108 = arith.maximumf %106, %107 : vector<8x128xf32>
    %109 = arith.addf %34, %108 : vector<8x128xf32>
    %c2_42 = arith.constant 2 : index
    %c0_43 = arith.constant 0 : index
    %c0_44 = arith.constant 0 : index
    %110 = vector.load %arg5[%c2_42, %c0_43, %c0_44] : memref<4x3x128xf32, #tpu.memory_space<vmem>>, vector<1x3x128xf32>
    %111 = vector.shape_cast %110 : vector<1x3x128xf32> to vector<3x128xf32>
    %c2_45 = arith.constant 2 : index
    %c0_46 = arith.constant 0 : index
    %c0_47 = arith.constant 0 : index
    %112 = vector.load %arg4[%c2_45, %c0_46, %c0_47] : memref<4x128x128xbf16, #tpu.memory_space<vmem>>, vector<1x128x128xbf16>
    %113 = vector.shape_cast %112 : vector<1x128x128xbf16> to vector<128x128xbf16>
    %114 = vector.extract_strided_slice %111 {offsets = [0, 0], sizes = [1, 128], strides = [1, 1]} : vector<3x128xf32> to vector<1x128xf32>
    %115 = vector.extract_strided_slice %111 {offsets = [1, 0], sizes = [1, 128], strides = [1, 1]} : vector<3x128xf32> to vector<1x128xf32>
    %116 = vector.extract_strided_slice %111 {offsets = [2, 0], sizes = [1, 128], strides = [1, 1]} : vector<3x128xf32> to vector<1x128xf32>
    %117 = arith.truncf %109 : vector<8x128xf32> to vector<8x128xbf16>
    %cst_48 = arith.constant dense<0.000000e+00> : vector<8x128xf32>
    %118 = tpu.matmul %117, %113, %cst_48 {dimension_numbers = #tpu.dot_dimension_numbers<[1], [0], [0], [1], [0, 0, 1, 1], [], []>} : vector<8x128xbf16>, vector<128x128xbf16>, vector<8x128xf32> -> vector<8x128xf32>
    %119 = vector.broadcast %114 : vector<1x128xf32> to vector<8x128xf32>
    %120 = arith.addf %118, %119 : vector<8x128xf32>
    %cst_49 = arith.constant dense<0.000000e+00> : vector<8xf32>
    %121 = vector.multi_reduction <add>, %120, %cst_49 [1] : vector<8x128xf32> to vector<8xf32>
    %122 = vector.shape_cast %121 : vector<8xf32> to vector<8x1xf32>
    %123 = arith.mulf %120, %120 : vector<8x128xf32>
    %cst_50 = arith.constant dense<0.000000e+00> : vector<8xf32>
    %124 = vector.multi_reduction <add>, %123, %cst_50 [1] : vector<8x128xf32> to vector<8xf32>
    %125 = vector.shape_cast %124 : vector<8xf32> to vector<8x1xf32>
    %cst_51 = arith.constant 1.562500e-02 : f32
    %126 = vector.broadcast %cst_51 : f32 to vector<8x1xf32>
    %127 = arith.mulf %122, %126 : vector<8x1xf32>
    %cst_52 = arith.constant 1.562500e-02 : f32
    %128 = vector.broadcast %cst_52 : f32 to vector<8x1xf32>
    %129 = arith.mulf %125, %128 : vector<8x1xf32>
    %130 = arith.mulf %127, %127 : vector<8x1xf32>
    %131 = arith.subf %129, %130 : vector<8x1xf32>
    %cst_53 = arith.constant 0.000000e+00 : f32
    %132 = vector.broadcast %cst_53 : f32 to vector<8x1xf32>
    %133 = arith.maximumf %131, %132 : vector<8x1xf32>
    %134 = vector.broadcast %127 : vector<8x1xf32> to vector<8x128xf32>
    %135 = arith.subf %120, %134 : vector<8x128xf32>
    %cst_54 = arith.constant 9.99999974E-6 : f32
    %136 = vector.broadcast %cst_54 : f32 to vector<8x1xf32>
    %137 = arith.addf %133, %136 : vector<8x1xf32>
    %138 = math.rsqrt %137 : vector<8x1xf32>
    %139 = vector.broadcast %138 : vector<8x1xf32> to vector<8x128xf32>
    %140 = arith.mulf %135, %139 : vector<8x128xf32>
    %141 = vector.broadcast %115 : vector<1x128xf32> to vector<8x128xf32>
    %142 = arith.mulf %140, %141 : vector<8x128xf32>
    %143 = vector.broadcast %116 : vector<1x128xf32> to vector<8x128xf32>
    %144 = arith.addf %142, %143 : vector<8x128xf32>
    %cst_55 = arith.constant 0.000000e+00 : f32
    %145 = vector.broadcast %cst_55 : f32 to vector<8x128xf32>
    %146 = arith.maximumf %144, %145 : vector<8x128xf32>
    %c3 = arith.constant 3 : index
    %c0_56 = arith.constant 0 : index
    %c0_57 = arith.constant 0 : index
    %147 = vector.load %arg5[%c3, %c0_56, %c0_57] : memref<4x3x128xf32, #tpu.memory_space<vmem>>, vector<1x3x128xf32>
    %148 = vector.shape_cast %147 : vector<1x3x128xf32> to vector<3x128xf32>
    %c3_58 = arith.constant 3 : index
    %c0_59 = arith.constant 0 : index
    %c0_60 = arith.constant 0 : index
    %149 = vector.load %arg4[%c3_58, %c0_59, %c0_60] : memref<4x128x128xbf16, #tpu.memory_space<vmem>>, vector<1x128x128xbf16>
    %150 = vector.shape_cast %149 : vector<1x128x128xbf16> to vector<128x128xbf16>
    %151 = vector.extract_strided_slice %148 {offsets = [0, 0], sizes = [1, 128], strides = [1, 1]} : vector<3x128xf32> to vector<1x128xf32>
    %152 = vector.extract_strided_slice %148 {offsets = [1, 0], sizes = [1, 128], strides = [1, 1]} : vector<3x128xf32> to vector<1x128xf32>
    %153 = vector.extract_strided_slice %148 {offsets = [2, 0], sizes = [1, 128], strides = [1, 1]} : vector<3x128xf32> to vector<1x128xf32>
    %154 = arith.truncf %146 : vector<8x128xf32> to vector<8x128xbf16>
    %cst_61 = arith.constant dense<0.000000e+00> : vector<8x128xf32>
    %155 = tpu.matmul %154, %150, %cst_61 {dimension_numbers = #tpu.dot_dimension_numbers<[1], [0], [0], [1], [0, 0, 1, 1], [], []>} : vector<8x128xbf16>, vector<128x128xbf16>, vector<8x128xf32> -> vector<8x128xf32>
    %156 = vector.broadcast %151 : vector<1x128xf32> to vector<8x128xf32>
    %157 = arith.addf %155, %156 : vector<8x128xf32>
    %cst_62 = arith.constant dense<0.000000e+00> : vector<8xf32>
    %158 = vector.multi_reduction <add>, %157, %cst_62 [1] : vector<8x128xf32> to vector<8xf32>
    %159 = vector.shape_cast %158 : vector<8xf32> to vector<8x1xf32>
    %160 = arith.mulf %157, %157 : vector<8x128xf32>
    %cst_63 = arith.constant dense<0.000000e+00> : vector<8xf32>
    %161 = vector.multi_reduction <add>, %160, %cst_63 [1] : vector<8x128xf32> to vector<8xf32>
    %162 = vector.shape_cast %161 : vector<8xf32> to vector<8x1xf32>
    %cst_64 = arith.constant 1.562500e-02 : f32
    %163 = vector.broadcast %cst_64 : f32 to vector<8x1xf32>
    %164 = arith.mulf %159, %163 : vector<8x1xf32>
    %cst_65 = arith.constant 1.562500e-02 : f32
    %165 = vector.broadcast %cst_65 : f32 to vector<8x1xf32>
    %166 = arith.mulf %162, %165 : vector<8x1xf32>
    %167 = arith.mulf %164, %164 : vector<8x1xf32>
    %168 = arith.subf %166, %167 : vector<8x1xf32>
    %cst_66 = arith.constant 0.000000e+00 : f32
    %169 = vector.broadcast %cst_66 : f32 to vector<8x1xf32>
    %170 = arith.maximumf %168, %169 : vector<8x1xf32>
    %171 = vector.broadcast %164 : vector<8x1xf32> to vector<8x128xf32>
    %172 = arith.subf %157, %171 : vector<8x128xf32>
    %cst_67 = arith.constant 9.99999974E-6 : f32
    %173 = vector.broadcast %cst_67 : f32 to vector<8x1xf32>
    %174 = arith.addf %170, %173 : vector<8x1xf32>
    %175 = math.rsqrt %174 : vector<8x1xf32>
    %176 = vector.broadcast %175 : vector<8x1xf32> to vector<8x128xf32>
    %177 = arith.mulf %172, %176 : vector<8x128xf32>
    %178 = vector.broadcast %152 : vector<1x128xf32> to vector<8x128xf32>
    %179 = arith.mulf %177, %178 : vector<8x128xf32>
    %180 = vector.broadcast %153 : vector<1x128xf32> to vector<8x128xf32>
    %181 = arith.addf %179, %180 : vector<8x128xf32>
    %cst_68 = arith.constant 0.000000e+00 : f32
    %182 = vector.broadcast %cst_68 : f32 to vector<8x128xf32>
    %183 = arith.maximumf %181, %182 : vector<8x128xf32>
    %184 = arith.addf %109, %183 : vector<8x128xf32>
    %185 = arith.truncf %184 : vector<8x128xf32> to vector<8x128xbf16>
    %c0_69 = arith.constant 0 : index
    %c0_70 = arith.constant 0 : index
    %186 = vector.load %arg6[%c0_69, %c0_70] : memref<128x128xbf16, #tpu.memory_space<vmem>>, vector<128x128xbf16>
    %cst_71 = arith.constant dense<0.000000e+00> : vector<8x128xf32>
    %187 = tpu.matmul %185, %186, %cst_71 {dimension_numbers = #tpu.dot_dimension_numbers<[1], [0], [0], [1], [0, 0, 1, 1], [], []>} : vector<8x128xbf16>, vector<128x128xbf16>, vector<8x128xf32> -> vector<8x128xf32>
    %c0_72 = arith.constant 0 : index
    %c0_73 = arith.constant 0 : index
    %188 = vector.load %arg7[%c0_72, %c0_73] : memref<1x128xf32, #tpu.memory_space<vmem>>, vector<1x128xf32>
    %189 = vector.broadcast %188 : vector<1x128xf32> to vector<8x128xf32>
    %190 = arith.addf %187, %189 : vector<8x128xf32>
    %c0_74 = arith.constant 0 : index
    %c0_75 = arith.constant 0 : index
    %191 = vector.load %arg8[%c0_74, %c0_75] : memref<8x128xf32, #tpu.memory_space<vmem>>, vector<8x128xf32>
    tpu.vector_store %arg8[%c0_74, %c0_75], %190 {strides = array<i32>} : memref<8x128xf32, #tpu.memory_space<vmem>>, vector<8x128xf32>,
    return
  }
  func.func @transform_0(%arg0: i32) -> (i32, i32) {
    %c0_i32 = arith.constant 0 : i32
    %c0_i32_0 = arith.constant 0 : i32
    return %arg0, %c0_i32 : i32, i32
  }
  func.func @transform_1(%arg0: i32) -> (i32, i32) {
    %c0_i32 = arith.constant 0 : i32
    %c0_i32_0 = arith.constant 0 : i32
    %c0_i32_1 = arith.constant 0 : i32
    return %c0_i32, %c0_i32_0 : i32, i32
  }
  func.func @transform_2(%arg0: i32) -> (i32, i32) {
    %c0_i32 = arith.constant 0 : i32
    %c0_i32_0 = arith.constant 0 : i32
    %c0_i32_1 = arith.constant 0 : i32
    return %c0_i32, %c0_i32_0 : i32, i32
  }
  func.func @transform_3(%arg0: i32) -> (i32, i32, i32) {
    %c0_i32 = arith.constant 0 : i32
    %c0_i32_0 = arith.constant 0 : i32
    %c0_i32_1 = arith.constant 0 : i32
    %c0_i32_2 = arith.constant 0 : i32
    return %c0_i32, %c0_i32_0, %c0_i32_1 : i32, i32, i32
  }
  func.func @transform_4(%arg0: i32) -> (i32, i32, i32) {
    %c0_i32 = arith.constant 0 : i32
    %c0_i32_0 = arith.constant 0 : i32
    %c0_i32_1 = arith.constant 0 : i32
    %c0_i32_2 = arith.constant 0 : i32
    return %c0_i32, %c0_i32_0, %c0_i32_1 : i32, i32, i32
  }
  func.func @transform_5(%arg0: i32) -> (i32, i32) {
    %c0_i32 = arith.constant 0 : i32
    %c0_i32_0 = arith.constant 0 : i32
    %c0_i32_1 = arith.constant 0 : i32
    return %c0_i32, %c0_i32_0 : i32, i32
  }
  func.func @transform_6(%arg0: i32) -> (i32, i32) {
    %c0_i32 = arith.constant 0 : i32
    %c0_i32_0 = arith.constant 0 : i32
    %c0_i32_1 = arith.constant 0 : i32
    return %c0_i32, %c0_i32_0 : i32, i32
  }
  func.func @transform_7(%arg0: i32) -> (i32, i32) {
    %c0_i32 = arith.constant 0 : i32
    %c0_i32_0 = arith.constant 0 : i32
    return %arg0, %c0_i32 : i32, i32
  }
}

</mosaic_0001>

<llo_original>
// kernel: tpu_custom_call.1
$region0: #{tpu_custom_call.1}
  #allocation0 [shape = 'u32[]', space=smem, size = 0x4, offset = 0x4, fixed_abs, tag = 'smem constant byte address 0x4 - core index']
  #allocation1 [shape = 'u32[72,128]{1,0:T(1,128)}', space=vmem, size = 0x9000, scoped, tag = 'internal scratch']
  %s0 = inlined_call_operand.vmem [shape: f32[16,128], index: 0, kind: input, shape index: {}]
  %s1 = inlined_call_operand.hbm [shape: bf16[128,128], index: 1, kind: input, shape index: {}]
  %s2 = inlined_call_operand.vmem [shape: f32[3,128], index: 2, kind: input, shape index: {}]
  %s3 = inlined_call_operand.hbm [shape: bf16[4,128,128], index: 3, kind: input, shape index: {}]
  %s4 = inlined_call_operand.vmem [shape: f32[4,3,128], index: 4, kind: input, shape index: {}]
  %s5 = inlined_call_operand.hbm [shape: bf16[128,128], index: 5, kind: input, shape index: {}]
  %s6 = inlined_call_operand.vmem [shape: f32[1,128], index: 6, kind: input, shape index: {}]
  %s7 = inlined_call_operand.hbm [shape: f32[16,128], index: 7, kind: output, shape index: {}]
  %s8 = sld [smem:[#allocation0]]
  $region73: #{tpu_custom_call.1} parent=0
    _
  %s10 = ssub.s32 1, %s8
  %s11 = scalar_select 0, %s10, %s8
  $region1: #{tpu_custom_call.1} parent=0
    #allocation2 [shape = 'u8[32768]{0}', space=vmem, size = 0x8000, scoped, tag = 'input window, operand 1, single buffered']
    #allocation3 [shape = 's32[2]{0}', space=sflag, size = 0x8, scoped, tag = 'scoped memory for tpu_custom_call.1']
    #allocation4 [shape = 's32[2]{0}', space=sflag, size = 0x8, scoped, tag = 'scoped memory for tpu_custom_call.1']
    #allocation5 [shape = 'u8[131072]{0}', space=vmem, size = 0x20000, scoped, tag = 'input window, operand 3, single buffered']
    #allocation6 [shape = 's32[1]{0}', space=sflag, size = 0x4, scoped, tag = 'scoped memory for tpu_custom_call.1']
    #allocation7 [shape = 'u8[32768]{0}', space=vmem, size = 0x8000, scoped, tag = 'input window, operand 5, single buffered']
    #allocation8 [shape = 'u8[8192]{0}', space=vmem, size = 0x2000, scoped, tag = 'output window, operand 0']
    %12 = vsyncpa [#allocation3], 0
    %13 = vsyncpa [#allocation6], 0
    %14 = vsyncpa [#allocation4], 0
    %s15 = scalar_lea.sflag [#allocation4], 1
    %16 = vsyncpa %s15, 0
    loop: start=0, step=1, limit=4
    $region2: #{tpu_custom_call.1} parent=1 // loop_pre_header
      _
    $region3: #{tpu_custom_call.1} parent=1 // loop_header
      %s18 = sphi 0, %s22
      %p19 = scmp.ge.s32.totalorder %s18, 4
      %s28 = sphi 0, %s30
      %s31 = sphi 0, %s28
      %s32 = sphi 0, %s31
      %s48 = sphi 0, %s32
      %s52 = sphi 0, %s52
      %s54 = sphi 0, %s52
      %s55 = sphi 0, %s54
      %s69 = sphi 0, %s55
      %s73 = sphi 0, %s73
      %s75 = sphi 0, %s73
      %s76 = sphi 0, %s75
      %s90 = sphi 0, %s76
      %s94 = sphi 0, %s94
      %s96 = sphi 0, %s94
      %s97 = sphi 0, %s96
      %s111 = sphi 0, %s97
      %s115 = sphi 0, %s115
      %s117 = sphi 0, %s115
      %s118 = sphi 0, %s117
      %s132 = sphi 0, %s118
      %s136 = sphi 0, %s136
      %s138 = sphi 0, %s136
      %s139 = sphi 0, %s138
      %s153 = sphi 0, %s139
      %s157 = sphi 0, %s157
      %s159 = sphi 0, %s157
      %s160 = sphi 0, %s159
      %s174 = sphi 0, %s160
      %s180 = sphi 0, %s182
      %s183 = sphi 0, %s180
      %s184 = sphi 0, %s183
      %s200 = sphi 0, %s184
    $region4: #{tpu_custom_call.1} parent=1 // loop_header_branch
      %21 = sbr.rel (%p19) target = $region8
    $region5: #{tpu_custom_call.1} parent=1 // loop_body
      %s23 = ssub.s32 %s18, 1
      %s24 = ssub.s32 %s18, 2
      %s25 = sadd.s32 %s18, 1
      %s26 = ssub.s32 %s18, %s25
      %p27 = scmp.eq.s32.totalorder %s26, 0
      %s29 = sadd.s32 %s28, 1
      %s30 = scalar_select %p27, %s28, %s29
      %p33 = pneg %p27
      %p34 = scmp.eq.s32.totalorder %s18, 1
      %p35 = por %p33, %p34
      %p36 = scmp.ne.s32.totalorder %s28, %s31
      %p37 = scmp.eq.s32.totalorder %s18, 0
      %p38 = por %p36, %p37
      %p39 = scmp.ne.s32.totalorder %s28, %s31
      %p40 = scmp.eq.s32.totalorder %s23, 1
      %p41 = por %p39, %p40
      %p42 = scmp.ne.s32.totalorder %s31, %s32
      %p43 = scmp.eq.s32.totalorder %s23, 0
      %p44 = por %p42, %p43
      %p45 = scmp.ne.s32.totalorder %s31, %s32
      %p46 = scmp.eq.s32.totalorder %s24, 1
      %p47 = por %p45, %p46
      %p49 = scmp.ne.s32.totalorder %s32, %s48
      %p50 = scmp.eq.s32.totalorder %s24, 0
      %p51 = por %p49, %p50
      %s53 = sadd.s32 %s52, 1
      %p56 = scmp.eq.s32.totalorder %s18, 1
      %p57 = scmp.ne.s32.totalorder %s52, %s54
      %p58 = scmp.eq.s32.totalorder %s18, 0
      %p59 = por %p57, %p58
      %p60 = scmp.ne.s32.totalorder %s52, %s54
      %p61 = scmp.eq.s32.totalorder %s23, 1
      %p62 = por %p60, %p61
      %p63 = scmp.ne.s32.totalorder %s54, %s55
      %p64 = scmp.eq.s32.totalorder %s23, 0
      %p65 = por %p63, %p64
      %p66 = scmp.ne.s32.totalorder %s54, %s55
      %p67 = scmp.eq.s32.totalorder %s24, 1
      %p68 = por %p66, %p67
      %p70 = scmp.ne.s32.totalorder %s55, %s69
      %p71 = scmp.eq.s32.totalorder %s24, 0
      %p72 = por %p70, %p71
      %s74 = sadd.s32 %s73, 1
      %p77 = scmp.eq.s32.totalorder %s18, 1
      %p78 = scmp.ne.s32.totalorder %s73, %s75
      %p79 = scmp.eq.s32.totalorder %s18, 0
      %p80 = por %p78, %p79
      %p81 = scmp.ne.s32.totalorder %s73, %s75
      %p82 = scmp.eq.s32.totalorder %s23, 1
      %p83 = por %p81, %p82
      %p84 = scmp.ne.s32.totalorder %s75, %s76
      %p85 = scmp.eq.s32.totalorder %s23, 0
      %p86 = por %p84, %p85
      %p87 = scmp.ne.s32.totalorder %s75, %s76
      %p88 = scmp.eq.s32.totalorder %s24, 1
      %p89 = por %p87, %p88
      %p91 = scmp.ne.s32.totalorder %s76, %s90
      %p92 = scmp.eq.s32.totalorder %s24, 0
      %p93 = por %p91, %p92
      %s95 = sadd.s32 %s94, 1
      %p98 = scmp.eq.s32.totalorder %s18, 1
      %p99 = scmp.ne.s32.totalorder %s94, %s96
      %p100 = scmp.eq.s32.totalorder %s18, 0
      %p101 = por %p99, %p100
      %p102 = scmp.ne.s32.totalorder %s94, %s96
      %p103 = scmp.eq.s32.totalorder %s23, 1
      %p104 = por %p102, %p103
      %p105 = scmp.ne.s32.totalorder %s96, %s97
      %p106 = scmp.eq.s32.totalorder %s23, 0
      %p107 = por %p105, %p106
      %p108 = scmp.ne.s32.totalorder %s96, %s97
      %p109 = scmp.eq.s32.totalorder %s24, 1
      %p110 = por %p108, %p109
      %p112 = scmp.ne.s32.totalorder %s97, %s111
      %p113 = scmp.eq.s32.totalorder %s24, 0
      %p114 = por %p112, %p113
      %s116 = sadd.s32 %s115, 1
      %p119 = scmp.eq.s32.totalorder %s18, 1
      %p120 = scmp.ne.s32.totalorder %s115, %s117
      %p121 = scmp.eq.s32.totalorder %s18, 0
      %p122 = por %p120, %p121
      %p123 = scmp.ne.s32.totalorder %s115, %s117
      %p124 = scmp.eq.s32.totalorder %s23, 1
      %p125 = por %p123, %p124
      %p126 = scmp.ne.s32.totalorder %s117, %s118
      %p127 = scmp.eq.s32.totalorder %s23, 0
      %p128 = por %p126, %p127
      %p129 = scmp.ne.s32.totalorder %s117, %s118
      %p130 = scmp.eq.s32.totalorder %s24, 1
      %p131 = por %p129, %p130
      %p133 = scmp.ne.s32.totalorder %s118, %s132
      %p134 = scmp.eq.s32.totalorder %s24, 0
      %p135 = por %p133, %p134
      %s137 = sadd.s32 %s136, 1
      %p140 = scmp.eq.s32.totalorder %s18, 1
      %p141 = scmp.ne.s32.totalorder %s136, %s138
      %p142 = scmp.eq.s32.totalorder %s18, 0
      %p143 = por %p141, %p142
      %p144 = scmp.ne.s32.totalorder %s136, %s138
      %p145 = scmp.eq.s32.totalorder %s23, 1
      %p146 = por %p144, %p145
      %p147 = scmp.ne.s32.totalorder %s138, %s139
      %p148 = scmp.eq.s32.totalorder %s23, 0
      %p149 = por %p147, %p148
      %p150 = scmp.ne.s32.totalorder %s138, %s139
      %p151 = scmp.eq.s32.totalorder %s24, 1
      %p152 = por %p150, %p151
      %p154 = scmp.ne.s32.totalorder %s139, %s153
      %p155 = scmp.eq.s32.totalorder %s24, 0
      %p156 = por %p154, %p155
      %s158 = sadd.s32 %s157, 1
      %p161 = scmp.eq.s32.totalorder %s18, 1
      %p162 = scmp.ne.s32.totalorder %s157, %s159
      %p163 = scmp.eq.s32.totalorder %s18, 0
      %p164 = por %p162, %p163
      %p165 = scmp.ne.s32.totalorder %s157, %s159
      %p166 = scmp.eq.s32.totalorder %s23, 1
      %p167 = por %p165, %p166
      %p168 = scmp.ne.s32.totalorder %s159, %s160
      %p169 = scmp.eq.s32.totalorder %s23, 0
      %p170 = por %p168, %p169
      %p171 = scmp.ne.s32.totalorder %s159, %s160
      %p172 = scmp.eq.s32.totalorder %s24, 1
      %p173 = por %p171, %p172
      %p175 = scmp.ne.s32.totalorder %s160, %s174
      %p176 = scmp.eq.s32.totalorder %s24, 0
      %p177 = por %p175, %p176
      %s178 = ssub.s32 %s18, %s25
      %p179 = scmp.eq.s32.totalorder %s178, 0
      %s181 = sadd.s32 %s180, 1
      %s182 = scalar_select %p179, %s180, %s181
      %p185 = pneg %p179
      %p186 = scmp.eq.s32.totalorder %s18, 1
      %p187 = por %p185, %p186
      %p188 = scmp.ne.s32.totalorder %s180, %s183
      %p189 = scmp.eq.s32.totalorder %s18, 0
      %p190 = por %p188, %p189
      %p191 = scmp.ne.s32.totalorder %s180, %s183
      %p192 = scmp.eq.s32.totalorder %s23, 1
      %p193 = por %p191, %p192
      %p194 = scmp.ne.s32.totalorder %s183, %s184
      %p195 = scmp.eq.s32.totalorder %s23, 0
      %p196 = por %p194, %p195
      %p197 = scmp.ne.s32.totalorder %s183, %s184
      %p198 = scmp.eq.s32.totalorder %s24, 1
      %p199 = por %p197, %p198
      %p201 = scmp.ne.s32.totalorder %s184, %s200
      %p202 = scmp.eq.s32.totalorder %s24, 0
      %p203 = por %p201, %p202
      %p204 = scmp.le.s32.totalorder 1, %s18
      %p205 = scmp.lt.s32.totalorder %s18, 3
      %p206 = pnand %p204, %p205
      %p207 = pneg %p206
      // Predicated region
      $region9: #{tpu_custom_call.1} parent=5 // pred_check
        _
      $region10: #{tpu_custom_call.1} parent=5 // pred_check_branch
        %209 = sbr.rel (%p206) target = $region12
      $region11: #{tpu_custom_call.1} parent=5 // pred_region
        %s210 = ssub.s32 %s18, 1
        // Predicated region
        $region13: #{tpu_custom_call.1} parent=11 // pred_check
          %p211 = pneg %p65
        $region14: #{tpu_custom_call.1} parent=11 // pred_check_branch
          %213 = sbr.rel (%p211) target = $region16
        $region15: #{tpu_custom_call.1} parent=11 // pred_region
          %215 = vsyncadd [#allocation3], 0
          %s216 = sshll.u32 %s1, 4
          %s217 = int_to_ptr.hbm [resolvable:$true] %s216
          %s218 = sshll.u32 [#allocation2], 4
          %s219 = int_to_ptr.vmem [resolvable:$true] %s218
          %224 = dma.hbm_to_vmem [thread:$0]  %s217, 1024, %s219, [#allocation3], 64, 64, 4
        $region16: #{tpu_custom_call.1} parent=11 // pred_fallthru
          _
        // Predicated region
        $region17: #{tpu_custom_call.1} parent=11 // pred_check
          %p225 = pneg %p86
        $region18: #{tpu_custom_call.1} parent=11 // pred_check_branch
          %227 = sbr.rel (%p225) target = $region20
        $region19: #{tpu_custom_call.1} parent=11 // pred_region
          _
        $region20: #{tpu_custom_call.1} parent=11 // pred_fallthru
          _
        // Predicated region
        $region21: #{tpu_custom_call.1} parent=11 // pred_check
          %p228 = pneg %p107
        $region22: #{tpu_custom_call.1} parent=11 // pred_check_branch
          %230 = sbr.rel (%p228) target = $region24
        $region23: #{tpu_custom_call.1} parent=11 // pred_region
          %232 = vsyncadd [#allocation6], 0
          %s233 = sshll.u32 %s3, 4
          %s234 = int_to_ptr.hbm [resolvable:$true] %s233
          %s235 = sshll.u32 [#allocation5], 4
          %s236 = int_to_ptr.vmem [resolvable:$true] %s235
          %241 = dma.hbm_to_vmem [thread:$0]  %s234, 4096, %s236, [#allocation6], 64, 64, 4
        $region24: #{tpu_custom_call.1} parent=11 // pred_fallthru
          _
        // Predicated region
        $region25: #{tpu_custom_call.1} parent=11 // pred_check
          %p242 = pneg %p128
        $region26: #{tpu_custom_call.1} parent=11 // pred_check_branch
          %244 = sbr.rel (%p242) target = $region28
        $region27: #{tpu_custom_call.1} parent=11 // pred_region
          _
        $region28: #{tpu_custom_call.1} parent=11 // pred_fallthru
          _
        // Predicated region
        $region29: #{tpu_custom_call.1} parent=11 // pred_check
          %p245 = pneg %p149
        $region30: #{tpu_custom_call.1} parent=11 // pred_check_branch
          %247 = sbr.rel (%p245) target = $region32
        $region31: #{tpu_custom_call.1} parent=11 // pred_region
          %249 = vsyncadd [#allocation6], 0
          %s250 = sshll.u32 %s5, 4
          %s251 = int_to_ptr.hbm [resolvable:$true] %s250
          %s252 = sshll.u32 [#allocation7], 4
          %s253 = int_to_ptr.vmem [resolvable:$true] %s252
          %258 = dma.hbm_to_vmem [thread:$0]  %s251, 1024, %s253, [#allocation6], 64, 64, 4
        $region32: #{tpu_custom_call.1} parent=11 // pred_fallthru
          _
        // Predicated region
        $region33: #{tpu_custom_call.1} parent=11 // pred_check
          %p259 = pneg %p170
        $region34: #{tpu_custom_call.1} parent=11 // pred_check_branch
          %261 = sbr.rel (%p259) target = $region36
        $region35: #{tpu_custom_call.1} parent=11 // pred_region
          _
        $region36: #{tpu_custom_call.1} parent=11 // pred_fallthru
          _
      $region12: #{tpu_custom_call.1} parent=5 // pred_fallthru
        _
      %p262 = scmp.lt.s32.totalorder %s18, 2
      // Predicated region
      $region37: #{tpu_custom_call.1} parent=5 // pred_check
        %p263 = pneg %p262
      $region38: #{tpu_custom_call.1} parent=5 // pred_check_branch
        %265 = sbr.rel (%p263) target = $region40
      $region39: #{tpu_custom_call.1} parent=5 // pred_region
        // Predicated region
        $region41: #{tpu_custom_call.1} parent=39 // pred_check
          %p266 = pneg %p38
        $region42: #{tpu_custom_call.1} parent=39 // pred_check_branch
          %268 = sbr.rel (%p266) target = $region44
        $region43: #{tpu_custom_call.1} parent=39 // pred_region
          %p269 = scmp.lt.s32.totalorder %s18, 1
          %s270 = scalar_select %p269, %s18, 1
          %s271 = smul.addr %s270, 8
          %s272 = scalar_lea.vmem %s0, %s271
        $region44: #{tpu_custom_call.1} parent=39 // pred_fallthru
          _
      $region40: #{tpu_custom_call.1} parent=5 // pred_fallthru
        _
      %p273 = scmp.le.s32.totalorder 1, %s18
      %p274 = scmp.lt.s32.totalorder %s18, 3
      %p275 = pnand %p273, %p274
      %p276 = pneg %p275
      // Predicated region
      $region45: #{tpu_custom_call.1} parent=5 // pred_check
        _
      $region46: #{tpu_custom_call.1} parent=5 // pred_check_branch
        %278 = sbr.rel (%p275) target = $region48
      $region47: #{tpu_custom_call.1} parent=5 // pred_region
        %s279 = ssub.s32 %s18, 1
        // Predicated region
        $region49: #{tpu_custom_call.1} parent=47 // pred_check
          %p280 = pneg %p65
        $region50: #{tpu_custom_call.1} parent=47 // pred_check_branch
          %282 = sbr.rel (%p280) target = $region52
        $region51: #{tpu_custom_call.1} parent=47 // pred_region
          %284 = dma.done [#allocation3], 1024
        $region52: #{tpu_custom_call.1} parent=47 // pred_fallthru
          _
        // Predicated region
        $region53: #{tpu_custom_call.1} parent=47 // pred_check
          %p285 = pneg %p107
        $region54: #{tpu_custom_call.1} parent=47 // pred_check_branch
          %287 = sbr.rel (%p285) target = $region56
        $region55: #{tpu_custom_call.1} parent=47 // pred_region
          %289 = dma.done [#allocation6], 4096
        $region56: #{tpu_custom_call.1} parent=47 // pred_fallthru
          _
        // Predicated region
        $region57: #{tpu_custom_call.1} parent=47 // pred_check
          %p290 = pneg %p149
        $region58: #{tpu_custom_call.1} parent=47 // pred_check_branch
          %292 = sbr.rel (%p290) target = $region60
        $region59: #{tpu_custom_call.1} parent=47 // pred_region
          %294 = dma.done [#allocation6], 1024
        $region60: #{tpu_custom_call.1} parent=47 // pred_fallthru
          _
        %p295 = scmp.lt.s32.totalorder %s23, 1
        %s296 = scalar_select %p295, %s23, 1
        %s297 = smul.addr %s296, 8
        %s298 = scalar_lea.vmem %s0, %s297
        %p299 = pneg %p44
        %p300 = pneg %p41
        %p301 = pneg %p65
        %p302 = pneg %p62
        %p303 = pneg %p86
        %p304 = pneg %p83
        %p305 = pneg %p107
        %p306 = pneg %p104
        %p307 = pneg %p128
        %p308 = pneg %p125
        %p309 = pneg %p149
        %p310 = pneg %p146
        %p311 = pneg %p170
        %p312 = pneg %p167
        %p313 = pneg %p196
        %p314 = pneg %p193
        %s315 = sand.u32 %s183, 1
        %s316 = scalar_lea.sflag [#allocation4], %s315
        %s317 = sand.u32 %s183, 1
        %s318 = smul.addr %s317, 8
        %s319 = scalar_lea.vmem [#allocation8], %s318
        %p320 = scmp.lt.s32.totalorder %s23, 1
        %s321 = scalar_select %p320, %s23, 1
        %s322 = smul.addr %s321, 8
        %s323 = scalar_lea.vmem %s0, %s322
        %v324 = vld [vmem:[%s323] sm:$0xff]
        %v325 = vld [vmem:[#allocation2] sm:$0xf]
        %v326 = vld [vmem:[#allocation2 + $0x4] sm:$0xf]
        %v327 = vld [vmem:[#allocation2 + $0x8] sm:$0xf]
        %v328 = vld [vmem:[#allocation2 + $0xc] sm:$0xf]
        %v329 = vld [vmem:[#allocation2 + $0x10] sm:$0xf]
        %v330 = vld [vmem:[#allocation2 + $0x14] sm:$0xf]
        %v331 = vld [vmem:[#allocation2 + $0x18] sm:$0xf]
        %v332 = vld [vmem:[#allocation2 + $0x1c] sm:$0xf]
        %v333 = vld [vmem:[#allocation2 + $0x20] sm:$0xf]
        %v334 = vld [vmem:[#allocation2 + $0x24] sm:$0xf]
        %v335 = vld [vmem:[#allocation2 + $0x28] sm:$0xf]
        %v336 = vld [vmem:[#allocation2 + $0x2c] sm:$0xf]
        %v337 = vld [vmem:[#allocation2 + $0x30] sm:$0xf]
        %v338 = vld [vmem:[#allocation2 + $0x34] sm:$0xf]
        %v339 = vld [vmem:[#allocation2 + $0x38] sm:$0xf]
        %v340 = vld [vmem:[#allocation2 + $0x3c] sm:$0xf]
        %v341 = vld [vmem:[%s2] sm:$0x1]
        %v342 = vld [vmem:[%s2 + $0x1] sm:$0x1]
        %v343 = vld [vmem:[%s2 + $0x2] sm:$0x1]
        %v344 = vpack.c.bf16 %v324, %v324
        %v345 = vperm.slane %v341, 0
        %v362 = vunpack.c.l.b16 %v325
        %v363 = vunpack.c.l.b16 %v326
        %v364 = vunpack.c.l.b16 %v327
        %v365 = vunpack.c.l.b16 %v328
        %v366 = vunpack.c.l.b16 %v329
        %v367 = vunpack.c.l.b16 %v330
        %v368 = vunpack.c.l.b16 %v331
        %v369 = vunpack.c.l.b16 %v332
        %v370 = vunpack.c.l.b16 %v333
        %v371 = vunpack.c.l.b16 %v334
        %v372 = vunpack.c.l.b16 %v335
        %v373 = vunpack.c.l.b16 %v336
        %v374 = vunpack.c.l.b16 %v337
        %v375 = vunpack.c.l.b16 %v338
        %v376 = vunpack.c.l.b16 %v339
        %v377 = vunpack.c.l.b16 %v340
        %v378 = vpack.c.b16 %v363, %v362
        %v379 = vpack.c.b16 %v365, %v364
        %v380 = vpack.c.b16 %v367, %v366
        %v381 = vpack.c.b16 %v369, %v368
        %v382 = vpack.c.b16 %v371, %v370
        %v383 = vpack.c.b16 %v373, %v372
        %v384 = vpack.c.b16 %v375, %v374
        %v385 = vpack.c.b16 %v377, %v376
        %394 = vmatpush.bf16.msra.mxu0 %v385
        %395 = vmatpush.bf16.msra.mxu0 %v384
        %396 = vmatpush.bf16.msra.mxu0 %v383
        %397 = vmatpush.bf16.msra.mxu0 %v382
        %398 = vmatpush.bf16.msra.mxu0 %v381
        %399 = vmatpush.bf16.msra.mxu0 %v380
        %400 = vmatpush.bf16.msra.mxu0 %v379
        %401 = vmatpush.bf16.msra.mxu0 %v378
        %402 = vmatmul.bf16.gmra.mxu0 %v344
        %v403 = vpop.f32.mrf.mxu0
        %v404 = vadd.f32 %v345, %v403
        %v405 = vpop.f32.mrf.mxu0
        %406 = vdwg.mxu0
        %407 = vadd.xlane.f32.xlu0 %v404
        %v408 = vpop.xlane.xlu0 %407
        %v409 = vmul.f32 %v404, %v404
        %410 = vadd.xlane.f32.xlu0 %v409
        %v411 = vpop.xlane.xlu0 %410
        %v412 = vmul.f32 %v408, 0.015625
        %v413 = vmul.f32 %v411, 0.015625
        %v414 = vmul.f32 %v412, %v412
        %v415 = vsub.f32 %v413, %v414
        %v416 = vmax.f32 %v415, 0.0
        %v417 = vsub.f32 %v404, %v412
        %v418 = vadd.f32 %v416, 1e-05
        %v419 = vrsqrt.pop %v418
        %v420 = vmul.f32 %v419, %v418
        %v421 = vmul.f32 %v420, %v419
        %v422 = vmul.f32 0.5, %v421
        %v423 = vsub.f32 1.5, %v422
        %v424 = vmul.f32 %v419, %v423
        %vm425 = vweird.f32 %v418
        %vm426 = vweird.f32 %v419
        %vm427 = vmor %vm425, %vm426
        %v428 = vsel %vm427, %v419, %v424
        %v429 = vmul.f32 %v417, %v428
        %v430 = vperm.slane %v342, 0
        %v431 = vmul.f32 %v429, %v430
        %v432 = vperm.slane %v343, 0
        %v433 = vadd.f32 %v431, %v432
        %v434 = vmax.f32 %v433, 0.0
        %v435 = vld [vmem:[%s4] sm:$0x7]
        %v436 = vld [vmem:[#allocation5] sm:$0xf]
        %v437 = vld [vmem:[#allocation5 + $0x4] sm:$0xf]
        %v438 = vld [vmem:[#allocation5 + $0x8] sm:$0xf]
        %v439 = vld [vmem:[#allocation5 + $0xc] sm:$0xf]
        %v440 = vld [vmem:[#allocation5 + $0x10] sm:$0xf]
        %v441 = vld [vmem:[#allocation5 + $0x14] sm:$0xf]
        %v442 = vld [vmem:[#allocation5 + $0x18] sm:$0xf]
        %v443 = vld [vmem:[#allocation5 + $0x1c] sm:$0xf]
        %v444 = vld [vmem:[#allocation5 + $0x20] sm:$0xf]
        %v445 = vld [vmem:[#allocation5 + $0x24] sm:$0xf]
        %v446 = vld [vmem:[#allocation5 + $0x28] sm:$0xf]
        %v447 = vld [vmem:[#allocation5 + $0x2c] sm:$0xf]
        %v448 = vld [vmem:[#allocation5 + $0x30] sm:$0xf]
        %v449 = vld [vmem:[#allocation5 + $0x34] sm:$0xf]
        %v450 = vld [vmem:[#allocation5 + $0x38] sm:$0xf]
        %v451 = vld [vmem:[#allocation5 + $0x3c] sm:$0xf]
        %v452 = vpack.c.bf16 %v434, %v434
        %v453 = vperm.slane %v435, 0
        %v470 = vunpack.c.l.b16 %v436
        %v471 = vunpack.c.l.b16 %v437
        %v472 = vunpack.c.l.b16 %v438
        %v473 = vunpack.c.l.b16 %v439
        %v474 = vunpack.c.l.b16 %v440
        %v475 = vunpack.c.l.b16 %v441
        %v476 = vunpack.c.l.b16 %v442
        %v477 = vunpack.c.l.b16 %v443
        %v478 = vunpack.c.l.b16 %v444
        %v479 = vunpack.c.l.b16 %v445
        %v480 = vunpack.c.l.b16 %v446
        %v481 = vunpack.c.l.b16 %v447
        %v482 = vunpack.c.l.b16 %v448
        %v483 = vunpack.c.l.b16 %v449
        %v484 = vunpack.c.l.b16 %v450
        %v485 = vunpack.c.l.b16 %v451
        %v486 = vpack.c.b16 %v471, %v470
        %v487 = vpack.c.b16 %v473, %v472
        %v488 = vpack.c.b16 %v475, %v474
        %v489 = vpack.c.b16 %v477, %v476
        %v490 = vpack.c.b16 %v479, %v478
        %v491 = vpack.c.b16 %v481, %v480
        %v492 = vpack.c.b16 %v483, %v482
        %v493 = vpack.c.b16 %v485, %v484
        %502 = vmatpush.bf16.msra.mxu0 %v493
        %503 = vmatpush.bf16.msra.mxu0 %v492
        %504 = vmatpush.bf16.msra.mxu0 %v491
        %505 = vmatpush.bf16.msra.mxu0 %v490
        %506 = vmatpush.bf16.msra.mxu0 %v489
        %507 = vmatpush.bf16.msra.mxu0 %v488
        %508 = vmatpush.bf16.msra.mxu0 %v487
        %509 = vmatpush.bf16.msra.mxu0 %v486
        %510 = vmatmul.bf16.gmra.mxu0 %v452
        %v511 = vpop.f32.mrf.mxu0
        %v512 = vadd.f32 %v453, %v511
        %v513 = vpop.f32.mrf.mxu0
        %514 = vdwg.mxu0
        %515 = vadd.xlane.f32.xlu0 %v512
        %v516 = vpop.xlane.xlu0 %515
        %v517 = vmul.f32 %v512, %v512
        %518 = vadd.xlane.f32.xlu0 %v517
        %v519 = vpop.xlane.xlu0 %518
        %v520 = vmul.f32 %v516, 0.015625
        %v521 = vmul.f32 %v519, 0.015625
        %v522 = vmul.f32 %v520, %v520
        %v523 = vsub.f32 %v521, %v522
        %v524 = vmax.f32 %v523, 0.0
        %v525 = vsub.f32 %v512, %v520
        %v526 = vadd.f32 %v524, 1e-05
        %v527 = vrsqrt.pop %v526
        %v528 = vmul.f32 %v527, %v526
        %v529 = vmul.f32 %v528, %v527
        %v530 = vmul.f32 0.5, %v529
        %v531 = vsub.f32 1.5, %v530
        %v532 = vmul.f32 %v527, %v531
        %vm533 = vweird.f32 %v526
        %vm534 = vweird.f32 %v527
        %vm535 = vmor %vm533, %vm534
        %v536 = vsel %vm535, %v527, %v532
        %v537 = vmul.f32 %v525, %v536
        %v538 = vperm.slane %v435, 1
        %v539 = vmul.f32 %v537, %v538
        %v540 = vperm.slane %v435, 2
        %v541 = vadd.f32 %v539, %v540
        %v542 = vmax.f32 %v541, 0.0
        %s543 = scalar_lea.vmem %s4, 4
        %v544 = vld [vmem:[%s543] sm:$0x7]
        %s545 = scalar_lea.vmem [#allocation5], 64
        %v546 = vld [vmem:[%s545] sm:$0xf]
        %v547 = vld [vmem:[%s545 + $0x4] sm:$0xf]
        %v548 = vld [vmem:[%s545 + $0x8] sm:$0xf]
        %v549 = vld [vmem:[%s545 + $0xc] sm:$0xf]
        %v550 = vld [vmem:[%s545 + $0x10] sm:$0xf]
        %v551 = vld [vmem:[%s545 + $0x14] sm:$0xf]
        %v552 = vld [vmem:[%s545 + $0x18] sm:$0xf]
        %v553 = vld [vmem:[%s545 + $0x1c] sm:$0xf]
        %v554 = vld [vmem:[%s545 + $0x20] sm:$0xf]
        %v555 = vld [vmem:[%s545 + $0x24] sm:$0xf]
        %v556 = vld [vmem:[%s545 + $0x28] sm:$0xf]
        %v557 = vld [vmem:[%s545 + $0x2c] sm:$0xf]
        %v558 = vld [vmem:[%s545 + $0x30] sm:$0xf]
        %v559 = vld [vmem:[%s545 + $0x34] sm:$0xf]
        %v560 = vld [vmem:[%s545 + $0x38] sm:$0xf]
        %v561 = vld [vmem:[%s545 + $0x3c] sm:$0xf]
        %v562 = vpack.c.bf16 %v542, %v542
        %v563 = vperm.slane %v544, 0
        %v580 = vunpack.c.l.b16 %v546
        %v581 = vunpack.c.l.b16 %v547
        %v582 = vunpack.c.l.b16 %v548
        %v583 = vunpack.c.l.b16 %v549
        %v584 = vunpack.c.l.b16 %v550
        %v585 = vunpack.c.l.b16 %v551
        %v586 = vunpack.c.l.b16 %v552
        %v587 = vunpack.c.l.b16 %v553
        %v588 = vunpack.c.l.b16 %v554
        %v589 = vunpack.c.l.b16 %v555
        %v590 = vunpack.c.l.b16 %v556
        %v591 = vunpack.c.l.b16 %v557
        %v592 = vunpack.c.l.b16 %v558
        %v593 = vunpack.c.l.b16 %v559
        %v594 = vunpack.c.l.b16 %v560
        %v595 = vunpack.c.l.b16 %v561
        %v596 = vpack.c.b16 %v581, %v580
        %v597 = vpack.c.b16 %v583, %v582
        %v598 = vpack.c.b16 %v585, %v584
        %v599 = vpack.c.b16 %v587, %v586
        %v600 = vpack.c.b16 %v589, %v588
        %v601 = vpack.c.b16 %v591, %v590
        %v602 = vpack.c.b16 %v593, %v592
        %v603 = vpack.c.b16 %v595, %v594
        %612 = vmatpush.bf16.msra.mxu0 %v603
        %613 = vmatpush.bf16.msra.mxu0 %v602
        %614 = vmatpush.bf16.msra.mxu0 %v601
        %615 = vmatpush.bf16.msra.mxu0 %v600
        %616 = vmatpush.bf16.msra.mxu0 %v599
        %617 = vmatpush.bf16.msra.mxu0 %v598
        %618 = vmatpush.bf16.msra.mxu0 %v597
        %619 = vmatpush.bf16.msra.mxu0 %v596
        %620 = vmatmul.bf16.gmra.mxu0 %v562
        %v621 = vpop.f32.mrf.mxu0
        %v622 = vadd.f32 %v563, %v621
        %v623 = vpop.f32.mrf.mxu0
        %624 = vdwg.mxu0
        %625 = vadd.xlane.f32.xlu0 %v622
        %v626 = vpop.xlane.xlu0 %625
        %v627 = vmul.f32 %v622, %v622
        %628 = vadd.xlane.f32.xlu0 %v627
        %v629 = vpop.xlane.xlu0 %628
        %v630 = vmul.f32 %v626, 0.015625
        %v631 = vmul.f32 %v629, 0.015625
        %v632 = vmul.f32 %v630, %v630
        %v633 = vsub.f32 %v631, %v632
        %v634 = vmax.f32 %v633, 0.0
        %v635 = vsub.f32 %v622, %v630
        %v636 = vadd.f32 %v634, 1e-05
        %v637 = vrsqrt.pop %v636
        %v638 = vmul.f32 %v637, %v636
        %v639 = vmul.f32 %v638, %v637
        %v640 = vmul.f32 0.5, %v639
        %v641 = vsub.f32 1.5, %v640
        %v642 = vmul.f32 %v637, %v641
        %vm643 = vweird.f32 %v636
        %vm644 = vweird.f32 %v637
        %vm645 = vmor %vm643, %vm644
        %v646 = vsel %vm645, %v637, %v642
        %v647 = vmul.f32 %v635, %v646
        %v648 = vperm.slane %v544, 1
        %v649 = vmul.f32 %v647, %v648
        %v650 = vperm.slane %v544, 2
        %v651 = vadd.f32 %v649, %v650
        %v652 = vmax.f32 %v651, 0.0
        %v653 = vadd.f32 %v434, %v652
        %s654 = scalar_lea.vmem %s4, 8
        %v655 = vld [vmem:[%s654] sm:$0x7]
        %s656 = scalar_lea.vmem [#allocation5], 128
        %v657 = vld [vmem:[%s656] sm:$0xf]
        %v658 = vld [vmem:[%s656 + $0x4] sm:$0xf]
        %v659 = vld [vmem:[%s656 + $0x8] sm:$0xf]
        %v660 = vld [vmem:[%s656 + $0xc] sm:$0xf]
        %v661 = vld [vmem:[%s656 + $0x10] sm:$0xf]
        %v662 = vld [vmem:[%s656 + $0x14] sm:$0xf]
        %v663 = vld [vmem:[%s656 + $0x18] sm:$0xf]
        %v664 = vld [vmem:[%s656 + $0x1c] sm:$0xf]
        %v665 = vld [vmem:[%s656 + $0x20] sm:$0xf]
        %v666 = vld [vmem:[%s656 + $0x24] sm:$0xf]
        %v667 = vld [vmem:[%s656 + $0x28] sm:$0xf]
        %v668 = vld [vmem:[%s656 + $0x2c] sm:$0xf]
        %v669 = vld [vmem:[%s656 + $0x30] sm:$0xf]
        %v670 = vld [vmem:[%s656 + $0x34] sm:$0xf]
        %v671 = vld [vmem:[%s656 + $0x38] sm:$0xf]
        %v672 = vld [vmem:[%s656 + $0x3c] sm:$0xf]
        %v673 = vpack.c.bf16 %v653, %v653
        %v674 = vperm.slane %v655, 0
        %v691 = vunpack.c.l.b16 %v657
        %v692 = vunpack.c.l.b16 %v658
        %v693 = vunpack.c.l.b16 %v659
        %v694 = vunpack.c.l.b16 %v660
        %v695 = vunpack.c.l.b16 %v661
        %v696 = vunpack.c.l.b16 %v662
        %v697 = vunpack.c.l.b16 %v663
        %v698 = vunpack.c.l.b16 %v664
        %v699 = vunpack.c.l.b16 %v665
        %v700 = vunpack.c.l.b16 %v666
        %v701 = vunpack.c.l.b16 %v667
        %v702 = vunpack.c.l.b16 %v668
        %v703 = vunpack.c.l.b16 %v669
        %v704 = vunpack.c.l.b16 %v670
        %v705 = vunpack.c.l.b16 %v671
        %v706 = vunpack.c.l.b16 %v672
        %v707 = vpack.c.b16 %v692, %v691
        %v708 = vpack.c.b16 %v694, %v693
        %v709 = vpack.c.b16 %v696, %v695
        %v710 = vpack.c.b16 %v698, %v697
        %v711 = vpack.c.b16 %v700, %v699
        %v712 = vpack.c.b16 %v702, %v701
        %v713 = vpack.c.b16 %v704, %v703
        %v714 = vpack.c.b16 %v706, %v705
        %723 = vmatpush.bf16.msra.mxu0 %v714
        %724 = vmatpush.bf16.msra.mxu0 %v713
        %725 = vmatpush.bf16.msra.mxu0 %v712
        %726 = vmatpush.bf16.msra.mxu0 %v711
        %727 = vmatpush.bf16.msra.mxu0 %v710
        %728 = vmatpush.bf16.msra.mxu0 %v709
        %729 = vmatpush.bf16.msra.mxu0 %v708
        %730 = vmatpush.bf16.msra.mxu0 %v707
        %731 = vmatmul.bf16.gmra.mxu0 %v673
        %v732 = vpop.f32.mrf.mxu0
        %v733 = vadd.f32 %v674, %v732
        %v734 = vpop.f32.mrf.mxu0
        %735 = vdwg.mxu0
        %736 = vadd.xlane.f32.xlu0 %v733
        %v737 = vpop.xlane.xlu0 %736
        %v738 = vmul.f32 %v733, %v733
        %739 = vadd.xlane.f32.xlu0 %v738
        %v740 = vpop.xlane.xlu0 %739
        %v741 = vmul.f32 %v737, 0.015625
        %v742 = vmul.f32 %v740, 0.015625
        %v743 = vmul.f32 %v741, %v741
        %v744 = vsub.f32 %v742, %v743
        %v745 = vmax.f32 %v744, 0.0
        %v746 = vsub.f32 %v733, %v741
        %v747 = vadd.f32 %v745, 1e-05
        %v748 = vrsqrt.pop %v747
        %v749 = vmul.f32 %v748, %v747
        %v750 = vmul.f32 %v749, %v748
        %v751 = vmul.f32 0.5, %v750
        %v752 = vsub.f32 1.5, %v751
        %v753 = vmul.f32 %v748, %v752
        %vm754 = vweird.f32 %v747
        %vm755 = vweird.f32 %v748
        %vm756 = vmor %vm754, %vm755
        %v757 = vsel %vm756, %v748, %v753
        %v758 = vmul.f32 %v746, %v757
        %v759 = vperm.slane %v655, 1
        %v760 = vmul.f32 %v758, %v759
        %v761 = vperm.slane %v655, 2
        %v762 = vadd.f32 %v760, %v761
        %v763 = vmax.f32 %v762, 0.0
        %s764 = scalar_lea.vmem %s4, 12
        %v765 = vld [vmem:[%s764] sm:$0x7]
        %s766 = scalar_lea.vmem [#allocation5], 192
        %v767 = vld [vmem:[%s766] sm:$0xf]
        %v768 = vld [vmem:[%s766 + $0x4] sm:$0xf]
        %v769 = vld [vmem:[%s766 + $0x8] sm:$0xf]
        %v770 = vld [vmem:[%s766 + $0xc] sm:$0xf]
        %v771 = vld [vmem:[%s766 + $0x10] sm:$0xf]
        %v772 = vld [vmem:[%s766 + $0x14] sm:$0xf]
        %v773 = vld [vmem:[%s766 + $0x18] sm:$0xf]
        %v774 = vld [vmem:[%s766 + $0x1c] sm:$0xf]
        %v775 = vld [vmem:[%s766 + $0x20] sm:$0xf]
        %v776 = vld [vmem:[%s766 + $0x24] sm:$0xf]
        %v777 = vld [vmem:[%s766 + $0x28] sm:$0xf]
        %v778 = vld [vmem:[%s766 + $0x2c] sm:$0xf]
        %v779 = vld [vmem:[%s766 + $0x30] sm:$0xf]
        %v780 = vld [vmem:[%s766 + $0x34] sm:$0xf]
        %v781 = vld [vmem:[%s766 + $0x38] sm:$0xf]
        %v782 = vld [vmem:[%s766 + $0x3c] sm:$0xf]
        %v783 = vpack.c.bf16 %v763, %v763
        %v784 = vperm.slane %v765, 0
        %v801 = vunpack.c.l.b16 %v767
        %v802 = vunpack.c.l.b16 %v768
        %v803 = vunpack.c.l.b16 %v769
        %v804 = vunpack.c.l.b16 %v770
        %v805 = vunpack.c.l.b16 %v771
        %v806 = vunpack.c.l.b16 %v772
        %v807 = vunpack.c.l.b16 %v773
        %v808 = vunpack.c.l.b16 %v774
        %v809 = vunpack.c.l.b16 %v775
        %v810 = vunpack.c.l.b16 %v776
        %v811 = vunpack.c.l.b16 %v777
        %v812 = vunpack.c.l.b16 %v778
        %v813 = vunpack.c.l.b16 %v779
        %v814 = vunpack.c.l.b16 %v780
        %v815 = vunpack.c.l.b16 %v781
        %v816 = vunpack.c.l.b16 %v782
        %v817 = vpack.c.b16 %v802, %v801
        %v818 = vpack.c.b16 %v804, %v803
        %v819 = vpack.c.b16 %v806, %v805
        %v820 = vpack.c.b16 %v808, %v807
        %v821 = vpack.c.b16 %v810, %v809
        %v822 = vpack.c.b16 %v812, %v811
        %v823 = vpack.c.b16 %v814, %v813
        %v824 = vpack.c.b16 %v816, %v815
        %833 = vmatpush.bf16.msra.mxu0 %v824
        %834 = vmatpush.bf16.msra.mxu0 %v823
        %835 = vmatpush.bf16.msra.mxu0 %v822
        %836 = vmatpush.bf16.msra.mxu0 %v821
        %837 = vmatpush.bf16.msra.mxu0 %v820
        %838 = vmatpush.bf16.msra.mxu0 %v819
        %839 = vmatpush.bf16.msra.mxu0 %v818
        %840 = vmatpush.bf16.msra.mxu0 %v817
        %841 = vmatmul.bf16.gmra.mxu0 %v783
        %v842 = vpop.f32.mrf.mxu0
        %v843 = vadd.f32 %v784, %v842
        %v844 = vpop.f32.mrf.mxu0
        %845 = vdwg.mxu0
        %846 = vadd.xlane.f32.xlu0 %v843
        %v847 = vpop.xlane.xlu0 %846
        %v848 = vmul.f32 %v843, %v843
        %849 = vadd.xlane.f32.xlu0 %v848
        %v850 = vpop.xlane.xlu0 %849
        %v851 = vmul.f32 %v847, 0.015625
        %v852 = vmul.f32 %v850, 0.015625
        %v853 = vmul.f32 %v851, %v851
        %v854 = vsub.f32 %v852, %v853
        %v855 = vmax.f32 %v854, 0.0
        %v856 = vsub.f32 %v843, %v851
        %v857 = vadd.f32 %v855, 1e-05
        %v858 = vrsqrt.pop %v857
        %v859 = vmul.f32 %v858, %v857
        %v860 = vmul.f32 %v859, %v858
        %v861 = vmul.f32 0.5, %v860
        %v862 = vsub.f32 1.5, %v861
        %v863 = vmul.f32 %v858, %v862
        %vm864 = vweird.f32 %v857
        %vm865 = vweird.f32 %v858
        %vm866 = vmor %vm864, %vm865
        %v867 = vsel %vm866, %v858, %v863
        %v868 = vmul.f32 %v856, %v867
        %v869 = vperm.slane %v765, 1
        %v870 = vmul.f32 %v868, %v869
        %v871 = vperm.slane %v765, 2
        %v872 = vadd.f32 %v870, %v871
        %v873 = vmax.f32 %v872, 0.0
        %v874 = vadd.f32 %v653, %v873
        %v875 = vpack.c.bf16 %v874, %v874
        %v876 = vld [vmem:[#allocation7] sm:$0xf]
        %v877 = vld [vmem:[#allocation7 + $0x4] sm:$0xf]
        %v878 = vld [vmem:[#allocation7 + $0x8] sm:$0xf]
        %v879 = vld [vmem:[#allocation7 + $0xc] sm:$0xf]
        %v880 = vld [vmem:[#allocation7 + $0x10] sm:$0xf]
        %v881 = vld [vmem:[#allocation7 + $0x14] sm:$0xf]
        %v882 = vld [vmem:[#allocation7 + $0x18] sm:$0xf]
        %v883 = vld [vmem:[#allocation7 + $0x1c] sm:$0xf]
        %v884 = vld [vmem:[#allocation7 + $0x20] sm:$0xf]
        %v885 = vld [vmem:[#allocation7 + $0x24] sm:$0xf]
        %v886 = vld [vmem:[#allocation7 + $0x28] sm:$0xf]
        %v887 = vld [vmem:[#allocation7 + $0x2c] sm:$0xf]
        %v888 = vld [vmem:[#allocation7 + $0x30] sm:$0xf]
        %v889 = vld [vmem:[#allocation7 + $0x34] sm:$0xf]
        %v890 = vld [vmem:[#allocation7 + $0x38] sm:$0xf]
        %v891 = vld [vmem:[#allocation7 + $0x3c] sm:$0xf]
        %v892 = vld [vmem:[%s6] sm:$0x1]
        %v894 = vperm.slane %v892, 0
        %v912 = vunpack.c.l.b16 %v876
        %v913 = vunpack.c.l.b16 %v877
        %v914 = vunpack.c.l.b16 %v878
        %v915 = vunpack.c.l.b16 %v879
        %v916 = vunpack.c.l.b16 %v880
        %v917 = vunpack.c.l.b16 %v881
        %v918 = vunpack.c.l.b16 %v882
        %v919 = vunpack.c.l.b16 %v883
        %v920 = vunpack.c.l.b16 %v884
        %v921 = vunpack.c.l.b16 %v885
        %v922 = vunpack.c.l.b16 %v886
        %v923 = vunpack.c.l.b16 %v887
        %v924 = vunpack.c.l.b16 %v888
        %v925 = vunpack.c.l.b16 %v889
        %v926 = vunpack.c.l.b16 %v890
        %v927 = vunpack.c.l.b16 %v891
        %v928 = vpack.c.b16 %v913, %v912
        %v929 = vpack.c.b16 %v915, %v914
        %v930 = vpack.c.b16 %v917, %v916
        %v931 = vpack.c.b16 %v919, %v918
        %v932 = vpack.c.b16 %v921, %v920
        %v933 = vpack.c.b16 %v923, %v922
        %v934 = vpack.c.b16 %v925, %v924
        %v935 = vpack.c.b16 %v927, %v926
        %944 = vmatpush.bf16.msra.mxu0 %v935
        %945 = vmatpush.bf16.msra.mxu0 %v934
        %946 = vmatpush.bf16.msra.mxu0 %v933
        %947 = vmatpush.bf16.msra.mxu0 %v932
        %948 = vmatpush.bf16.msra.mxu0 %v931
        %949 = vmatpush.bf16.msra.mxu0 %v930
        %950 = vmatpush.bf16.msra.mxu0 %v929
        %951 = vmatpush.bf16.msra.mxu0 %v928
        %952 = vmatmul.bf16.gmra.mxu0 %v875
        %v953 = vpop.f32.mrf.mxu0
        %v954 = vadd.f32 %v894, %v953
        %v955 = vpop.f32.mrf.mxu0
        %956 = vdwg.mxu0
        %957 = vst [vmem:[%s319] sm:$0xff] %v954
        %s958 = sand.u32 %s183, 1
        %s959 = scalar_lea.sflag [#allocation4], %s958
        %s960 = sand.u32 %s183, 1
        %s961 = smul.addr %s960, 8
        %s962 = scalar_lea.vmem [#allocation8], %s961
        // Predicated region
        $region61: #{tpu_custom_call.1} parent=47 // pred_check
          %p963 = pneg %p193
        $region62: #{tpu_custom_call.1} parent=47 // pred_check_branch
          %965 = sbr.rel (%p963) target = $region64
        $region63: #{tpu_custom_call.1} parent=47 // pred_region
          %967 = vsyncadd %s959, 0
          %s968 = smul.addr %s23, 8
          %s969 = scalar_lea.hbm %s7, %s968
          %s971 = sshll.u32 %s962, 4
          %s972 = int_to_ptr.vmem [resolvable:$true] %s971
          %s973 = sshll.u32 %s969, 4
          %s974 = int_to_ptr.hbm [resolvable:$true] %s973
          %976 = dma.vmem_to_hbm [thread:$0]  %s972, 128, %s974, %s959
        $region64: #{tpu_custom_call.1} parent=47 // pred_fallthru
          _
      $region48: #{tpu_custom_call.1} parent=5 // pred_fallthru
        _
      %p977 = scmp.le.s32.totalorder 2, %s18
      // Predicated region
      $region65: #{tpu_custom_call.1} parent=5 // pred_check
        %p978 = pneg %p977
      $region66: #{tpu_custom_call.1} parent=5 // pred_check_branch
        %980 = sbr.rel (%p978) target = $region68
      $region67: #{tpu_custom_call.1} parent=5 // pred_region
        %s981 = ssub.s32 %s18, 2
        // Predicated region
        $region69: #{tpu_custom_call.1} parent=67 // pred_check
          %p982 = pneg %p199
        $region70: #{tpu_custom_call.1} parent=67 // pred_check_branch
          %984 = sbr.rel (%p982) target = $region72
        $region71: #{tpu_custom_call.1} parent=67 // pred_region
          %s985 = sand.u32 %s184, 1
          %s986 = scalar_lea.sflag [#allocation4], %s985
          %s987 = sand.u32 %s184, 1
          %s988 = smul.addr %s987, 8
          %s989 = scalar_lea.vmem [#allocation8], %s988
          %991 = dma.done %s986, 128
        $region72: #{tpu_custom_call.1} parent=67 // pred_fallthru
          _
      $region68: #{tpu_custom_call.1} parent=5 // pred_fallthru
        _
    $region6: #{tpu_custom_call.1} parent=1 // loop_footer
      %s22 = sadd.s32 1, %s18
    $region7: #{tpu_custom_call.1} parent=1 // loop_footer_branch
      %17 = sbr.rel target = $region3
    $region8: #{tpu_custom_call.1} parent=1 // loop_exit
      _
    %992 = vsyncpa [#allocation3], 1
    %s993 = scalar_lea.sflag [#allocation3], 1
    %994 = vsyncpa %s993, 1
    %995 = vsyncpa [#allocation6], 1
    %996 = vsyncpa [#allocation4], 1
    %s997 = scalar_lea.sflag [#allocation4], 1
    %998 = vsyncpa %s997, 1

</llo_original>
